<compile_context>
chip_gen: v5e
topology: v5e:2x2
jax: 0.10.0
libtpu: 0.0.40
codegen_flags: <defaults>
</compile_context>

<pallas_src>
import numpy as np

import jax
import jax.numpy as jnp
from jax import lax
from jax.experimental import pallas as pl
from jax.experimental.pallas import tpu as pltpu


def _reflect_indices(n, pad=3):
    """Source indices of ReflectionPad(pad) along a length-n axis (length n+2*pad)."""
    left = list(range(pad, 0, -1))                 # [3, 2, 1]
    mid = list(range(n))                           # [0 .. n-1]
    right = list(range(n - 2, n - 2 - pad, -1))    # [n-2, n-3, n-4]
    return np.array(left + mid + right, dtype=np.int32)


def _build_conv_matrix(w_hwio, W):
    """Fold the 7 column (kw) taps + column reflection padding of a 7x7 conv into a
    banded matrix:
        Bp[kh*W*Cin + wo*Cin + i, w*Cout + o] = sum_kw [colmap(w+kw) == wo] * w[kh,kw,i,o]
    so that the conv becomes  out = xs @ Bp  with xs the row-reflection-padded,
    row-tap-stacked activations built inside the kernel."""
    K, K2, Cin, Cout = w_hwio.shape
    assert K == 7 and K2 == 7
    colmap = _reflect_indices(W, 3)                # (W+6,)
    S = np.zeros((K, W, W), np.float32)            # S[kw, wo, w]
    for kw in range(K):
        for w in range(W):
            S[kw, colmap[w + kw], w] = 1.0
    Bp = jnp.einsum('kpw,hkio->hpiwo', jnp.asarray(S), w_hwio)   # (7, W, Cin, W, Cout)
    return Bp.reshape(K * W * Cin, W * Cout)


def _make_fused_kernel(H, W, C):
    WC = W * C

    def kernel(x_ref, B1_ref, b1_ref, B2_ref, b2_ref, out_ref, xp_ref, xs_ref):
        # xp_ref: VMEM scratch (H+6, W*C)  -- row-reflection-padded activation
        # xs_ref: VMEM scratch (H, 7*W*C)  -- 7 row taps stacked along lanes

        def conv7(xin, B_ref, b_ref):
            # In-kernel ReflectionPad(3) along rows (sublane axis) into scratch.
            xp_ref[3:3 + H, :] = xin
            xp_ref[0:1, :] = xin[3:4]
            xp_ref[1:2, :] = xin[2:3]
            xp_ref[2:3, :] = xin[1:2]
            xp_ref[H + 3:H + 4, :] = xin[H - 2:H - 1]
            xp_ref[H + 4:H + 5, :] = xin[H - 3:H - 2]
            xp_ref[H + 5:H + 6, :] = xin[H - 4:H - 3]
            # im2col over the 7 row taps only (kw taps + column reflection are
            # already folded into the banded weight matrix B).
            for kh in range(7):
                xs_ref[:, kh * WC:(kh + 1) * WC] = xp_ref[kh:kh + H, :]
            # Single MXU matmul per conv: (H, 7*W*C) @ (7*W*C, W*C).
            acc = jnp.dot(xs_ref[...], B_ref[...],
                          preferred_element_type=jnp.float32)
            return acc + b_ref[...]                    # lane-dense bias epilogue

        x = x_ref[0].astype(jnp.float32)               # (H, W*C)
        y = jnp.maximum(conv7(x, B1_ref, b1_ref), 0.0)  # pad -> conv1 -> ReLU
        z = conv7(y, B2_ref, b2_ref)                    # pad -> conv2
        out_ref[0] = (x + z).astype(out_ref.dtype)      # residual add

    return kernel


@jax.jit
def residual_block2(x, w1, b1, w2, b2):
    """x: (N, H, W, C) NHWC.  w*: (7, 7, C, C) HWIO.  b*: (C,)."""
    N, H, W, C = x.shape
    assert H >= 4 and W >= 7, "reflection pad of 3 needs H>=4, W>=7"
    WC = W * C

    Bp1 = _build_conv_matrix(w1, W)                 # (7*W*C, W*C)
    Bp2 = _build_conv_matrix(w2, W)
    b1t = jnp.tile(b1, W).reshape(1, WC)            # lane-dense tiled bias
    b2t = jnp.tile(b2, W).reshape(1, WC)
    x2d = x.reshape(N, H, WC)                       # fuse (W, C) into lanes (free)

    out = pl.pallas_call(
        _make_fused_kernel(H, W, C),
        out_shape=jax.ShapeDtypeStruct((N, H, WC), x.dtype),
        grid=(N,),
        in_specs=[
            pl.BlockSpec((1, H, WC), lambda i: (i, 0, 0)),      # activation
            pl.BlockSpec((7 * WC, WC), lambda i: (0, 0)),       # conv1 matrix
            pl.BlockSpec((1, WC), lambda i: (0, 0)),            # conv1 bias
            pl.BlockSpec((7 * WC, WC), lambda i: (0, 0)),       # conv2 matrix
            pl.BlockSpec((1, WC), lambda i: (0, 0)),            # conv2 bias
        ],
        out_specs=pl.BlockSpec((1, H, WC), lambda i: (i, 0, 0)),
        scratch_shapes=[
            pltpu.VMEM((H + 6, WC), jnp.float32),   # row-padded activation
            pltpu.VMEM((H, 7 * WC), jnp.float32),   # stacked row taps (im2col)
        ],
        compiler_params=pltpu.CompilerParams(
            dimension_semantics=("parallel",),
            vmem_limit_bytes=32 * 1024 * 1024,
        ),
    )(x2d, Bp1, b1t, Bp2, b2t)
    return out.reshape(N, H, W, C)


def _reference(x, w1, b1, w2, b2):
    """Pure-JAX reference (matches PyTorch semantics, NHWC layout)."""
    dn = ("NHWC", "HWIO", "NHWC")
    xp = jnp.pad(x, ((0, 0), (3, 3), (3, 3), (0, 0)), mode="reflect")
    y = lax.conv_general_dilated(xp, w1, (1, 1), "VALID",
                                 dimension_numbers=dn) + b1
    y = jnp.maximum(y, 0.0)
    yp = jnp.pad(y, ((0, 0), (3, 3), (3, 3), (0, 0)), mode="reflect")
    z = lax.conv_general_dilated(yp, w2, (1, 1), "VALID",
                                 dimension_numbers=dn) + b2
    return x + z


if __name__ == "__main__":
    # Small deterministic setup: N=2, C=4 (in_features=4), H=W=16.
    N, H, W, C = 2, 16, 16, 4
    key = jax.random.PRNGKey(0)
    kx, kw1, kb1, kw2, kb2 = jax.random.split(key, 5)

    fan_in = C * 7 * 7
    bound = 1.0 / (fan_in ** 0.5)
    x = jax.random.normal(kx, (N, H, W, C), jnp.float32)
    w1 = jax.random.uniform(kw1, (7, 7, C, C), jnp.float32, -bound, bound)
    b1 = jax.random.uniform(kb1, (C,), jnp.float32, -bound, bound)
    w2 = jax.random.uniform(kw2, (7, 7, C, C), jnp.float32, -bound, bound)
    b2 = jax.random.uniform(kb2, (C,), jnp.float32, -bound, bound)

    out = residual_block2(x, w1, b1, w2, b2)
    out = jax.block_until_ready(out)

    ref = _reference(x, w1, b1, w2, b2)
    assert out.shape == (N, H, W, C)
    assert jnp.allclose(out, ref, atol=1e-4, rtol=1e-4), "mismatch vs reference"

    print("KERNEL_OK")
</pallas_src>

<mosaic_0001>
module attributes {stable_mosaic.version = 11 : i64} {
  func.func @kernel(%arg0: i32, %arg1: memref<1x16x64xf32, #tpu.memory_space<vmem>>, %arg2: memref<448x64xf32, #tpu.memory_space<vmem>>, %arg3: memref<1x64xf32, #tpu.memory_space<vmem>>, %arg4: memref<448x64xf32, #tpu.memory_space<vmem>>, %arg5: memref<1x64xf32, #tpu.memory_space<vmem>>, %arg6: memref<1x16x64xf32, #tpu.memory_space<vmem>>, %arg7: memref<22x64xf32, #tpu.memory_space<vmem>>, %arg8: memref<16x448xf32, #tpu.memory_space<vmem>>) attributes {dimension_semantics = [#tpu.dimension_semantics<parallel>], iteration_bounds = array<i64: 2>, scalar_prefetch = 0 : i64, scratch_operands = 2 : i64, tpu.core_type = #tpu.core_type<tc>, window_params = [{transform_indices = @transform_0, window_bounds = array<i64: 1, 16, 64>}, {pipeline_mode = #tpu.pipeline_mode<synchronous>, transform_indices = @transform_1, window_bounds = array<i64: 448, 64>}, {pipeline_mode = #tpu.pipeline_mode<synchronous>, transform_indices = @transform_2, window_bounds = array<i64: 1, 64>}, {pipeline_mode = #tpu.pipeline_mode<synchronous>, transform_indices = @transform_3, window_bounds = array<i64: 448, 64>}, {pipeline_mode = #tpu.pipeline_mode<synchronous>, transform_indices = @transform_4, window_bounds = array<i64: 1, 64>}, {transform_indices = @transform_5, window_bounds = array<i64: 1, 16, 64>}]} {
    %c0 = arith.constant 0 : index
    %c0_0 = arith.constant 0 : index
    %c0_1 = arith.constant 0 : index
    %0 = vector.load %arg1[%c0, %c0_0, %c0_1] : memref<1x16x64xf32, #tpu.memory_space<vmem>>, vector<1x16x64xf32>
    %1 = vector.shape_cast %0 : vector<1x16x64xf32> to vector<16x64xf32>
    %c3 = arith.constant 3 : index
    %c0_2 = arith.constant 0 : index
    %2 = vector.load %arg7[%c3, %c0_2] : memref<22x64xf32, #tpu.memory_space<vmem>>, vector<16x64xf32>
    tpu.vector_store %arg7[%c3, %c0_2], %1 {strides = array<i32>} : memref<22x64xf32, #tpu.memory_space<vmem>>, vector<16x64xf32>,
    %3 = vector.extract_strided_slice %1 {offsets = [3, 0], sizes = [1, 64], strides = [1, 1]} : vector<16x64xf32> to vector<1x64xf32>
    %c0_3 = arith.constant 0 : index
    %c0_4 = arith.constant 0 : index
    %4 = vector.load %arg7[%c0_3, %c0_4] : memref<22x64xf32, #tpu.memory_space<vmem>>, vector<1x64xf32>
    tpu.vector_store %arg7[%c0_3, %c0_4], %3 {strides = array<i32>} : memref<22x64xf32, #tpu.memory_space<vmem>>, vector<1x64xf32>,
    %5 = vector.extract_strided_slice %1 {offsets = [2, 0], sizes = [1, 64], strides = [1, 1]} : vector<16x64xf32> to vector<1x64xf32>
    %c1 = arith.constant 1 : index
    %c0_5 = arith.constant 0 : index
    %6 = vector.load %arg7[%c1, %c0_5] : memref<22x64xf32, #tpu.memory_space<vmem>>, vector<1x64xf32>
    tpu.vector_store %arg7[%c1, %c0_5], %5 {strides = array<i32>} : memref<22x64xf32, #tpu.memory_space<vmem>>, vector<1x64xf32>,
    %7 = vector.extract_strided_slice %1 {offsets = [1, 0], sizes = [1, 64], strides = [1, 1]} : vector<16x64xf32> to vector<1x64xf32>
    %c2 = arith.constant 2 : index
    %c0_6 = arith.constant 0 : index
    %8 = vector.load %arg7[%c2, %c0_6] : memref<22x64xf32, #tpu.memory_space<vmem>>, vector<1x64xf32>
    tpu.vector_store %arg7[%c2, %c0_6], %7 {strides = array<i32>} : memref<22x64xf32, #tpu.memory_space<vmem>>, vector<1x64xf32>,
    %9 = vector.extract_strided_slice %1 {offsets = [14, 0], sizes = [1, 64], strides = [1, 1]} : vector<16x64xf32> to vector<1x64xf32>
    %c19 = arith.constant 19 : index
    %c0_7 = arith.constant 0 : index
    %10 = vector.load %arg7[%c19, %c0_7] : memref<22x64xf32, #tpu.memory_space<vmem>>, vector<1x64xf32>
    tpu.vector_store %arg7[%c19, %c0_7], %9 {strides = array<i32>} : memref<22x64xf32, #tpu.memory_space<vmem>>, vector<1x64xf32>,
    %11 = vector.extract_strided_slice %1 {offsets = [13, 0], sizes = [1, 64], strides = [1, 1]} : vector<16x64xf32> to vector<1x64xf32>
    %c20 = arith.constant 20 : index
    %c0_8 = arith.constant 0 : index
    %12 = vector.load %arg7[%c20, %c0_8] : memref<22x64xf32, #tpu.memory_space<vmem>>, vector<1x64xf32>
    tpu.vector_store %arg7[%c20, %c0_8], %11 {strides = array<i32>} : memref<22x64xf32, #tpu.memory_space<vmem>>, vector<1x64xf32>,
    %13 = vector.extract_strided_slice %1 {offsets = [12, 0], sizes = [1, 64], strides = [1, 1]} : vector<16x64xf32> to vector<1x64xf32>
    %c21 = arith.constant 21 : index
    %c0_9 = arith.constant 0 : index
    %14 = vector.load %arg7[%c21, %c0_9] : memref<22x64xf32, #tpu.memory_space<vmem>>, vector<1x64xf32>
    tpu.vector_store %arg7[%c21, %c0_9], %13 {strides = array<i32>} : memref<22x64xf32, #tpu.memory_space<vmem>>, vector<1x64xf32>,
    %c0_10 = arith.constant 0 : index
    %c0_11 = arith.constant 0 : index
    %15 = vector.load %arg7[%c0_10, %c0_11] : memref<22x64xf32, #tpu.memory_space<vmem>>, vector<16x64xf32>
    %c0_12 = arith.constant 0 : index
    %c0_13 = arith.constant 0 : index
    %16 = vector.load %arg8[%c0_12, %c0_13] : memref<16x448xf32, #tpu.memory_space<vmem>>, vector<16x64xf32>
    tpu.vector_store %arg8[%c0_12, %c0_13], %15 {strides = array<i32>} : memref<16x448xf32, #tpu.memory_space<vmem>>, vector<16x64xf32>,
    %c1_14 = arith.constant 1 : index
    %c0_15 = arith.constant 0 : index
    %17 = vector.load %arg7[%c1_14, %c0_15] : memref<22x64xf32, #tpu.memory_space<vmem>>, vector<16x64xf32>
    %c0_16 = arith.constant 0 : index
    %c64 = arith.constant 64 : index
    %18 = vector.load %arg8[%c0_16, %c64] : memref<16x448xf32, #tpu.memory_space<vmem>>, vector<16x64xf32>
    tpu.vector_store %arg8[%c0_16, %c64], %17 {strides = array<i32>} : memref<16x448xf32, #tpu.memory_space<vmem>>, vector<16x64xf32>,
    %c2_17 = arith.constant 2 : index
    %c0_18 = arith.constant 0 : index
    %19 = vector.load %arg7[%c2_17, %c0_18] : memref<22x64xf32, #tpu.memory_space<vmem>>, vector<16x64xf32>
    %c0_19 = arith.constant 0 : index
    %c128 = arith.constant 128 : index
    %20 = vector.load %arg8[%c0_19, %c128] : memref<16x448xf32, #tpu.memory_space<vmem>>, vector<16x64xf32>
    tpu.vector_store %arg8[%c0_19, %c128], %19 {strides = array<i32>} : memref<16x448xf32, #tpu.memory_space<vmem>>, vector<16x64xf32>,
    %c3_20 = arith.constant 3 : index
    %c0_21 = arith.constant 0 : index
    %21 = vector.load %arg7[%c3_20, %c0_21] : memref<22x64xf32, #tpu.memory_space<vmem>>, vector<16x64xf32>
    %c0_22 = arith.constant 0 : index
    %c192 = arith.constant 192 : index
    %22 = vector.load %arg8[%c0_22, %c192] : memref<16x448xf32, #tpu.memory_space<vmem>>, vector<16x64xf32>
    tpu.vector_store %arg8[%c0_22, %c192], %21 {strides = array<i32>} : memref<16x448xf32, #tpu.memory_space<vmem>>, vector<16x64xf32>,
    %c4 = arith.constant 4 : index
    %c0_23 = arith.constant 0 : index
    %23 = vector.load %arg7[%c4, %c0_23] : memref<22x64xf32, #tpu.memory_space<vmem>>, vector<16x64xf32>
    %c0_24 = arith.constant 0 : index
    %c256 = arith.constant 256 : index
    %24 = vector.load %arg8[%c0_24, %c256] : memref<16x448xf32, #tpu.memory_space<vmem>>, vector<16x64xf32>
    tpu.vector_store %arg8[%c0_24, %c256], %23 {strides = array<i32>} : memref<16x448xf32, #tpu.memory_space<vmem>>, vector<16x64xf32>,
    %c5 = arith.constant 5 : index
    %c0_25 = arith.constant 0 : index
    %25 = vector.load %arg7[%c5, %c0_25] : memref<22x64xf32, #tpu.memory_space<vmem>>, vector<16x64xf32>
    %c0_26 = arith.constant 0 : index
    %c320 = arith.constant 320 : index
    %26 = vector.load %arg8[%c0_26, %c320] : memref<16x448xf32, #tpu.memory_space<vmem>>, vector<16x64xf32>
    tpu.vector_store %arg8[%c0_26, %c320], %25 {strides = array<i32>} : memref<16x448xf32, #tpu.memory_space<vmem>>, vector<16x64xf32>,
    %c6 = arith.constant 6 : index
    %c0_27 = arith.constant 0 : index
    %27 = vector.load %arg7[%c6, %c0_27] : memref<22x64xf32, #tpu.memory_space<vmem>>, vector<16x64xf32>
    %c0_28 = arith.constant 0 : index
    %c384 = arith.constant 384 : index
    %28 = vector.load %arg8[%c0_28, %c384] : memref<16x448xf32, #tpu.memory_space<vmem>>, vector<16x64xf32>
    tpu.vector_store %arg8[%c0_28, %c384], %27 {strides = array<i32>} : memref<16x448xf32, #tpu.memory_space<vmem>>, vector<16x64xf32>,
    %c0_29 = arith.constant 0 : index
    %c0_30 = arith.constant 0 : index
    %29 = vector.load %arg8[%c0_29, %c0_30] : memref<16x448xf32, #tpu.memory_space<vmem>>, vector<16x448xf32>
    %c0_31 = arith.constant 0 : index
    %c0_32 = arith.constant 0 : index
    %30 = vector.load %arg2[%c0_31, %c0_32] : memref<448x64xf32, #tpu.memory_space<vmem>>, vector<448x64xf32>
    %cst = arith.constant dense<0.000000e+00> : vector<16x64xf32>
    %31 = tpu.matmul %29, %30, %cst {dimension_numbers = #tpu.dot_dimension_numbers<[1], [0], [0], [1], [0, 0, 1, 1], [], []>} : vector<16x448xf32>, vector<448x64xf32>, vector<16x64xf32> -> vector<16x64xf32>
    %c0_33 = arith.constant 0 : index
    %c0_34 = arith.constant 0 : index
    %32 = vector.load %arg3[%c0_33, %c0_34] : memref<1x64xf32, #tpu.memory_space<vmem>>, vector<1x64xf32>
    %33 = vector.broadcast %32 : vector<1x64xf32> to vector<16x64xf32>
    %34 = arith.addf %31, %33 : vector<16x64xf32>
    %cst_35 = arith.constant 0.000000e+00 : f32
    %35 = vector.broadcast %cst_35 : f32 to vector<16x64xf32>
    %36 = arith.maximumf %34, %35 : vector<16x64xf32>
    %c3_36 = arith.constant 3 : index
    %c0_37 = arith.constant 0 : index
    %37 = vector.load %arg7[%c3_36, %c0_37] : memref<22x64xf32, #tpu.memory_space<vmem>>, vector<16x64xf32>
    tpu.vector_store %arg7[%c3_36, %c0_37], %36 {strides = array<i32>} : memref<22x64xf32, #tpu.memory_space<vmem>>, vector<16x64xf32>,
    %38 = vector.extract_strided_slice %36 {offsets = [3, 0], sizes = [1, 64], strides = [1, 1]} : vector<16x64xf32> to vector<1x64xf32>
    %c0_38 = arith.constant 0 : index
    %c0_39 = arith.constant 0 : index
    %39 = vector.load %arg7[%c0_38, %c0_39] : memref<22x64xf32, #tpu.memory_space<vmem>>, vector<1x64xf32>
    tpu.vector_store %arg7[%c0_38, %c0_39], %38 {strides = array<i32>} : memref<22x64xf32, #tpu.memory_space<vmem>>, vector<1x64xf32>,
    %40 = vector.extract_strided_slice %36 {offsets = [2, 0], sizes = [1, 64], strides = [1, 1]} : vector<16x64xf32> to vector<1x64xf32>
    %c1_40 = arith.constant 1 : index
    %c0_41 = arith.constant 0 : index
    %41 = vector.load %arg7[%c1_40, %c0_41] : memref<22x64xf32, #tpu.memory_space<vmem>>, vector<1x64xf32>
    tpu.vector_store %arg7[%c1_40, %c0_41], %40 {strides = array<i32>} : memref<22x64xf32, #tpu.memory_space<vmem>>, vector<1x64xf32>,
    %42 = vector.extract_strided_slice %36 {offsets = [1, 0], sizes = [1, 64], strides = [1, 1]} : vector<16x64xf32> to vector<1x64xf32>
    %c2_42 = arith.constant 2 : index
    %c0_43 = arith.constant 0 : index
    %43 = vector.load %arg7[%c2_42, %c0_43] : memref<22x64xf32, #tpu.memory_space<vmem>>, vector<1x64xf32>
    tpu.vector_store %arg7[%c2_42, %c0_43], %42 {strides = array<i32>} : memref<22x64xf32, #tpu.memory_space<vmem>>, vector<1x64xf32>,
    %44 = vector.extract_strided_slice %36 {offsets = [14, 0], sizes = [1, 64], strides = [1, 1]} : vector<16x64xf32> to vector<1x64xf32>
    %c19_44 = arith.constant 19 : index
    %c0_45 = arith.constant 0 : index
    %45 = vector.load %arg7[%c19_44, %c0_45] : memref<22x64xf32, #tpu.memory_space<vmem>>, vector<1x64xf32>
    tpu.vector_store %arg7[%c19_44, %c0_45], %44 {strides = array<i32>} : memref<22x64xf32, #tpu.memory_space<vmem>>, vector<1x64xf32>,
    %46 = vector.extract_strided_slice %36 {offsets = [13, 0], sizes = [1, 64], strides = [1, 1]} : vector<16x64xf32> to vector<1x64xf32>
    %c20_46 = arith.constant 20 : index
    %c0_47 = arith.constant 0 : index
    %47 = vector.load %arg7[%c20_46, %c0_47] : memref<22x64xf32, #tpu.memory_space<vmem>>, vector<1x64xf32>
    tpu.vector_store %arg7[%c20_46, %c0_47], %46 {strides = array<i32>} : memref<22x64xf32, #tpu.memory_space<vmem>>, vector<1x64xf32>,
    %48 = vector.extract_strided_slice %36 {offsets = [12, 0], sizes = [1, 64], strides = [1, 1]} : vector<16x64xf32> to vector<1x64xf32>
    %c21_48 = arith.constant 21 : index
    %c0_49 = arith.constant 0 : index
    %49 = vector.load %arg7[%c21_48, %c0_49] : memref<22x64xf32, #tpu.memory_space<vmem>>, vector<1x64xf32>
    tpu.vector_store %arg7[%c21_48, %c0_49], %48 {strides = array<i32>} : memref<22x64xf32, #tpu.memory_space<vmem>>, vector<1x64xf32>,
    %c0_50 = arith.constant 0 : index
    %c0_51 = arith.constant 0 : index
    %50 = vector.load %arg7[%c0_50, %c0_51] : memref<22x64xf32, #tpu.memory_space<vmem>>, vector<16x64xf32>
    %c0_52 = arith.constant 0 : index
    %c0_53 = arith.constant 0 : index
    %51 = vector.load %arg8[%c0_52, %c0_53] : memref<16x448xf32, #tpu.memory_space<vmem>>, vector<16x64xf32>
    tpu.vector_store %arg8[%c0_52, %c0_53], %50 {strides = array<i32>} : memref<16x448xf32, #tpu.memory_space<vmem>>, vector<16x64xf32>,
    %c1_54 = arith.constant 1 : index
    %c0_55 = arith.constant 0 : index
    %52 = vector.load %arg7[%c1_54, %c0_55] : memref<22x64xf32, #tpu.memory_space<vmem>>, vector<16x64xf32>
    %c0_56 = arith.constant 0 : index
    %c64_57 = arith.constant 64 : index
    %53 = vector.load %arg8[%c0_56, %c64_57] : memref<16x448xf32, #tpu.memory_space<vmem>>, vector<16x64xf32>
    tpu.vector_store %arg8[%c0_56, %c64_57], %52 {strides = array<i32>} : memref<16x448xf32, #tpu.memory_space<vmem>>, vector<16x64xf32>,
    %c2_58 = arith.constant 2 : index
    %c0_59 = arith.constant 0 : index
    %54 = vector.load %arg7[%c2_58, %c0_59] : memref<22x64xf32, #tpu.memory_space<vmem>>, vector<16x64xf32>
    %c0_60 = arith.constant 0 : index
    %c128_61 = arith.constant 128 : index
    %55 = vector.load %arg8[%c0_60, %c128_61] : memref<16x448xf32, #tpu.memory_space<vmem>>, vector<16x64xf32>
    tpu.vector_store %arg8[%c0_60, %c128_61], %54 {strides = array<i32>} : memref<16x448xf32, #tpu.memory_space<vmem>>, vector<16x64xf32>,
    %c3_62 = arith.constant 3 : index
    %c0_63 = arith.constant 0 : index
    %56 = vector.load %arg7[%c3_62, %c0_63] : memref<22x64xf32, #tpu.memory_space<vmem>>, vector<16x64xf32>
    %c0_64 = arith.constant 0 : index
    %c192_65 = arith.constant 192 : index
    %57 = vector.load %arg8[%c0_64, %c192_65] : memref<16x448xf32, #tpu.memory_space<vmem>>, vector<16x64xf32>
    tpu.vector_store %arg8[%c0_64, %c192_65], %56 {strides = array<i32>} : memref<16x448xf32, #tpu.memory_space<vmem>>, vector<16x64xf32>,
    %c4_66 = arith.constant 4 : index
    %c0_67 = arith.constant 0 : index
    %58 = vector.load %arg7[%c4_66, %c0_67] : memref<22x64xf32, #tpu.memory_space<vmem>>, vector<16x64xf32>
    %c0_68 = arith.constant 0 : index
    %c256_69 = arith.constant 256 : index
    %59 = vector.load %arg8[%c0_68, %c256_69] : memref<16x448xf32, #tpu.memory_space<vmem>>, vector<16x64xf32>
    tpu.vector_store %arg8[%c0_68, %c256_69], %58 {strides = array<i32>} : memref<16x448xf32, #tpu.memory_space<vmem>>, vector<16x64xf32>,
    %c5_70 = arith.constant 5 : index
    %c0_71 = arith.constant 0 : index
    %60 = vector.load %arg7[%c5_70, %c0_71] : memref<22x64xf32, #tpu.memory_space<vmem>>, vector<16x64xf32>
    %c0_72 = arith.constant 0 : index
    %c320_73 = arith.constant 320 : index
    %61 = vector.load %arg8[%c0_72, %c320_73] : memref<16x448xf32, #tpu.memory_space<vmem>>, vector<16x64xf32>
    tpu.vector_store %arg8[%c0_72, %c320_73], %60 {strides = array<i32>} : memref<16x448xf32, #tpu.memory_space<vmem>>, vector<16x64xf32>,
    %c6_74 = arith.constant 6 : index
    %c0_75 = arith.constant 0 : index
    %62 = vector.load %arg7[%c6_74, %c0_75] : memref<22x64xf32, #tpu.memory_space<vmem>>, vector<16x64xf32>
    %c0_76 = arith.constant 0 : index
    %c384_77 = arith.constant 384 : index
    %63 = vector.load %arg8[%c0_76, %c384_77] : memref<16x448xf32, #tpu.memory_space<vmem>>, vector<16x64xf32>
    tpu.vector_store %arg8[%c0_76, %c384_77], %62 {strides = array<i32>} : memref<16x448xf32, #tpu.memory_space<vmem>>, vector<16x64xf32>,
    %c0_78 = arith.constant 0 : index
    %c0_79 = arith.constant 0 : index
    %64 = vector.load %arg8[%c0_78, %c0_79] : memref<16x448xf32, #tpu.memory_space<vmem>>, vector<16x448xf32>
    %c0_80 = arith.constant 0 : index
    %c0_81 = arith.constant 0 : index
    %65 = vector.load %arg4[%c0_80, %c0_81] : memref<448x64xf32, #tpu.memory_space<vmem>>, vector<448x64xf32>
    %cst_82 = arith.constant dense<0.000000e+00> : vector<16x64xf32>
    %66 = tpu.matmul %64, %65, %cst_82 {dimension_numbers = #tpu.dot_dimension_numbers<[1], [0], [0], [1], [0, 0, 1, 1], [], []>} : vector<16x448xf32>, vector<448x64xf32>, vector<16x64xf32> -> vector<16x64xf32>
    %c0_83 = arith.constant 0 : index
    %c0_84 = arith.constant 0 : index
    %67 = vector.load %arg5[%c0_83, %c0_84] : memref<1x64xf32, #tpu.memory_space<vmem>>, vector<1x64xf32>
    %68 = vector.broadcast %67 : vector<1x64xf32> to vector<16x64xf32>
    %69 = arith.addf %66, %68 : vector<16x64xf32>
    %70 = arith.addf %1, %69 : vector<16x64xf32>
    %c0_85 = arith.constant 0 : index
    %c0_86 = arith.constant 0 : index
    %c0_87 = arith.constant 0 : index
    %71 = vector.load %arg6[%c0_85, %c0_86, %c0_87] : memref<1x16x64xf32, #tpu.memory_space<vmem>>, vector<1x16x64xf32>
    %72 = vector.shape_cast %71 : vector<1x16x64xf32> to vector<16x64xf32>
    %73 = vector.shape_cast %70 : vector<16x64xf32> to vector<1x16x64xf32>
    tpu.vector_store %arg6[%c0_85, %c0_86, %c0_87], %73 {strides = array<i32>} : memref<1x16x64xf32, #tpu.memory_space<vmem>>, vector<1x16x64xf32>,
    return
  }
  func.func @transform_0(%arg0: i32) -> (i32, i32, i32) {
    %c0_i32 = arith.constant 0 : i32
    %c0_i32_0 = arith.constant 0 : i32
    %c0_i32_1 = arith.constant 0 : i32
    return %arg0, %c0_i32, %c0_i32_0 : i32, i32, i32
  }
  func.func @transform_1(%arg0: i32) -> (i32, i32) {
    %c0_i32 = arith.constant 0 : i32
    %c0_i32_0 = arith.constant 0 : i32
    %c0_i32_1 = arith.constant 0 : i32
    return %c0_i32, %c0_i32_0 : i32, i32
  }
  func.func @transform_2(%arg0: i32) -> (i32, i32) {
    %c0_i32 = arith.constant 0 : i32
    %c0_i32_0 = arith.constant 0 : i32
    %c0_i32_1 = arith.constant 0 : i32
    return %c0_i32, %c0_i32_0 : i32, i32
  }
  func.func @transform_3(%arg0: i32) -> (i32, i32) {
    %c0_i32 = arith.constant 0 : i32
    %c0_i32_0 = arith.constant 0 : i32
    %c0_i32_1 = arith.constant 0 : i32
    return %c0_i32, %c0_i32_0 : i32, i32
  }
  func.func @transform_4(%arg0: i32) -> (i32, i32) {
    %c0_i32 = arith.constant 0 : i32
    %c0_i32_0 = arith.constant 0 : i32
    %c0_i32_1 = arith.constant 0 : i32
    return %c0_i32, %c0_i32_0 : i32, i32
  }
  func.func @transform_5(%arg0: i32) -> (i32, i32, i32) {
    %c0_i32 = arith.constant 0 : i32
    %c0_i32_0 = arith.constant 0 : i32
    %c0_i32_1 = arith.constant 0 : i32
    return %arg0, %c0_i32, %c0_i32_0 : i32, i32, i32
  }
}

</mosaic_0001>

<llo_original>
// kernel: tile.13
$region0: #{tile.13}
  #allocation0 [shape = 's32[1]{0}', space=sflag, size = 0x4, scoped, tag = 'scoped memory for tile.13']
  %s0 = inlined_call_operand.vmem [shape: f32[4], index: 0, kind: input, shape index: {}]
  %s1 = inlined_call_operand.vmem [shape: f32[16,4], index: 1, kind: output, shape index: {}]
  // Predicated region
  $region2: #{tile.13} parent=0 // pred_check
    _
  $region3: #{tile.13} parent=0 // pred_check_branch
    %3 = sbr.rel (0) target = $region5
  $region4: #{tile.13} parent=0 // pred_region
    _
  $region5: #{tile.13} parent=0 // pred_fallthru
    _
  %v4 = vld [vmem:[%s0] ss:$0 sm:$0xff]
  %5 = vst [vmem:[%s1] sm:$0xff] %v4
  %s6 = scalar_lea.vmem %s1, 8
  %7 = vst [vmem:[%s6] sm:$0xff] %v4

// kernel: tile.14
$region0: #{tile.14}
  %s0 = inlined_call_operand.vmem [shape: f32[16,4], index: 0, kind: input, shape index: {}]
  %s1 = inlined_call_operand.vmem [shape: f32[1,64], index: 1, kind: output, shape index: {}]
  $region1: #{tile.14} parent=0
    #allocation0 [shape = 'u8[4096]{0}', space=vmem, size = 0x1000, scoped, tag = 'scoped mem for output reshape']
    %v2 = vld [vmem:[%s0] sm:$0x1]
    %vm3 = vcmask 31744
    %4 = vst.msk [vmem:[#allocation0] sm:$0x1] %vm3, %v2
    %s5 = scalar_lea.vmem %s0, 15
    %v6 = vld [vmem:[%s5] sm:$0x1]
    %7 = vrot.lane.b32.xlu0 %v6, 60
    %v8 = vpop.permute.xlu0 %7
    %vm9 = vcmask 523744
    %10 = vst.msk [vmem:[#allocation0] sm:$0x1] %vm9, %v8
    %s11 = scalar_lea.vmem %s0, 14
    %v12 = vld [vmem:[%s11] sm:$0x1]
    %13 = vrot.lane.b32.xlu0 %v12, 56
    %v14 = vpop.permute.xlu0 %13
    %vm15 = vcmask 490944
    %16 = vst.msk [vmem:[#allocation0] sm:$0x1] %vm15, %v14
    %s17 = scalar_lea.vmem %s0, 13
    %v18 = vld [vmem:[%s17] sm:$0x1]
    %19 = vrot.lane.b32.xlu0 %v18, 52
    %v20 = vpop.permute.xlu0 %19
    %vm21 = vcmask 458144
    %22 = vst.msk [vmem:[#allocation0] sm:$0x1] %vm21, %v20
    %s23 = scalar_lea.vmem %s0, 12
    %v24 = vld [vmem:[%s23] sm:$0x1]
    %25 = vrot.lane.b32.xlu0 %v24, 48
    %v26 = vpop.permute.xlu0 %25
    %vm27 = vcmask 425344
    %28 = vst.msk [vmem:[#allocation0] sm:$0x1] %vm27, %v26
    %s29 = scalar_lea.vmem %s0, 11
    %v30 = vld [vmem:[%s29] sm:$0x1]
    %31 = vrot.lane.b32.xlu0 %v30, 44
    %v32 = vpop.permute.xlu0 %31
    %vm33 = vcmask 392544
    %34 = vst.msk [vmem:[#allocation0] sm:$0x1] %vm33, %v32
    %s35 = scalar_lea.vmem %s0, 10
    %v36 = vld [vmem:[%s35] sm:$0x1]
    %37 = vrot.lane.b32.xlu0 %v36, 40
    %v38 = vpop.permute.xlu0 %37
    %vm39 = vcmask 359744
    %40 = vst.msk [vmem:[#allocation0] sm:$0x1] %vm39, %v38
    %s41 = scalar_lea.vmem %s0, 9
    %v42 = vld [vmem:[%s41] sm:$0x1]
    %43 = vrot.lane.b32.xlu0 %v42, 36
    %v44 = vpop.permute.xlu0 %43
    %vm45 = vcmask 326944
    %46 = vst.msk [vmem:[#allocation0] sm:$0x1] %vm45, %v44
    %s47 = scalar_lea.vmem %s0, 8
    %v48 = vld [vmem:[%s47] sm:$0x1]
    %49 = vrot.lane.b32.xlu0 %v48, 32
    %v50 = vpop.permute.xlu0 %49
    %vm51 = vcmask 294144
    %52 = vst.msk [vmem:[#allocation0] sm:$0x1] %vm51, %v50
    %s53 = scalar_lea.vmem %s0, 7
    %v54 = vld [vmem:[%s53] sm:$0x1]
    %55 = vrot.lane.b32.xlu0 %v54, 28
    %v56 = vpop.permute.xlu0 %55
    %vm57 = vcmask 261344
    %58 = vst.msk [vmem:[#allocation0] sm:$0x1] %vm57, %v56
    %s59 = scalar_lea.vmem %s0, 6
    %v60 = vld [vmem:[%s59] sm:$0x1]
    %61 = vrot.lane.b32.xlu0 %v60, 24
    %v62 = vpop.permute.xlu0 %61
    %vm63 = vcmask 228544
    %64 = vst.msk [vmem:[#allocation0] sm:$0x1] %vm63, %v62
    %s65 = scalar_lea.vmem %s0, 5
    %v66 = vld [vmem:[%s65] sm:$0x1]
    %67 = vrot.lane.b32.xlu0 %v66, 20
    %v68 = vpop.permute.xlu0 %67
    %vm69 = vcmask 195744
    %70 = vst.msk [vmem:[#allocation0] sm:$0x1] %vm69, %v68
    %s71 = scalar_lea.vmem %s0, 4
    %v72 = vld [vmem:[%s71] sm:$0x1]
    %73 = vrot.lane.b32.xlu0 %v72, 16
    %v74 = vpop.permute.xlu0 %73
    %vm75 = vcmask 162944
    %76 = vst.msk [vmem:[#allocation0] sm:$0x1] %vm75, %v74
    %s77 = scalar_lea.vmem %s0, 3
    %v78 = vld [vmem:[%s77] sm:$0x1]
    %79 = vrot.lane.b32.xlu0 %v78, 12
    %v80 = vpop.permute.xlu0 %79
    %vm81 = vcmask 130144
    %82 = vst.msk [vmem:[#allocation0] sm:$0x1] %vm81, %v80
    %s83 = scalar_lea.vmem %s0, 2
    %v84 = vld [vmem:[%s83] sm:$0x1]
    %85 = vrot.lane.b32.xlu0 %v84, 8
    %v86 = vpop.permute.xlu0 %85
    %vm87 = vcmask 97344
    %88 = vst.msk [vmem:[#allocation0] sm:$0x1] %vm87, %v86
    %s89 = scalar_lea.vmem %s0, 1
    %v90 = vld [vmem:[%s89] sm:$0x1]
    %91 = vrot.lane.b32.xlu0 %v90, 4
    %v92 = vpop.permute.xlu0 %91
    %vm93 = vcmask 64544
    %94 = vst.msk [vmem:[#allocation0] sm:$0x1] %vm93, %v92
    %s96 = ssub.s32 2, 1
    %v97 = vld [vmem:[#allocation0] sm:%s96]
    %s99 = ssub.s32 2, 1
    %100 = vst [vmem:[%s1] sm:%s99] %v97

// kernel: residual_block2.1
$region0: #{residual_block2.1}
  #allocation0 [shape = 'u32[]', space=smem, size = 0x4, offset = 0x4, fixed_abs, tag = 'smem constant byte address 0x4 - core index']
  #allocation1 [shape = 'u32[72,128]{1,0:T(1,128)}', space=vmem, size = 0x9000, scoped, tag = 'internal scratch']
  #allocation2 [shape = 'f32[22,64]{1,0:T(8,128)}', space=vmem, size = 0x3000, scoped, tag = 'scratch operand']
  #allocation3 [shape = 'f32[16,448]{1,0:T(8,128)}', space=vmem, size = 0x8000, scoped, tag = 'scratch operand']
  %s0 = inlined_call_operand.vmem [shape: f32[2,16,64], index: 0, kind: input, shape index: {}]
  %s1 = inlined_call_operand.vmem [shape: f32[448,64], index: 1, kind: input, shape index: {}]
  %s2 = inlined_call_operand.vmem [shape: f32[1,64], index: 2, kind: input, shape index: {}]
  %s3 = inlined_call_operand.vmem [shape: f32[448,64], index: 3, kind: input, shape index: {}]
  %s4 = inlined_call_operand.vmem [shape: f32[1,64], index: 4, kind: input, shape index: {}]
  %s5 = inlined_call_operand.vmem [shape: f32[2,16,64], index: 5, kind: output, shape index: {}]
  %s6 = sld [smem:[#allocation0]]
  $region53: #{residual_block2.1} parent=0
    _
  %s8 = ssub.s32 1, %s6
  %s9 = scalar_select 0, %s8, %s6
  loop: start=0, step=1, limit=4
  $region2: #{residual_block2.1} parent=0 // loop_pre_header
    _
  $region3: #{residual_block2.1} parent=0 // loop_header
    %s11 = sphi 0, %s15
    %p12 = scmp.ge.s32.totalorder %s11, 4
    %s21 = sphi 0, %s23
    %s24 = sphi 0, %s21
    %s25 = sphi 0, %s24
    %s41 = sphi 0, %s25
    %s45 = sphi 0, %s45
    %s47 = sphi 0, %s45
    %s48 = sphi 0, %s47
    %s62 = sphi 0, %s48
    %s66 = sphi 0, %s66
    %s68 = sphi 0, %s66
    %s69 = sphi 0, %s68
    %s83 = sphi 0, %s69
    %s87 = sphi 0, %s87
    %s89 = sphi 0, %s87
    %s90 = sphi 0, %s89
    %s104 = sphi 0, %s90
    %s108 = sphi 0, %s108
    %s110 = sphi 0, %s108
    %s111 = sphi 0, %s110
    %s125 = sphi 0, %s111
    %s131 = sphi 0, %s133
    %s134 = sphi 0, %s131
    %s135 = sphi 0, %s134
    %s151 = sphi 0, %s135
  $region4: #{residual_block2.1} parent=0 // loop_header_branch
    %14 = sbr.rel (%p12) target = $region8
  $region5: #{residual_block2.1} parent=0 // loop_body
    %s16 = ssub.s32 %s11, 1
    %s17 = ssub.s32 %s11, 2
    %s18 = sadd.s32 %s11, 1
    %s19 = ssub.s32 %s11, %s18
    %p20 = scmp.eq.s32.totalorder %s19, 0
    %s22 = sadd.s32 %s21, 1
    %s23 = scalar_select %p20, %s21, %s22
    %p26 = pneg %p20
    %p27 = scmp.eq.s32.totalorder %s11, 1
    %p28 = por %p26, %p27
    %p29 = scmp.ne.s32.totalorder %s21, %s24
    %p30 = scmp.eq.s32.totalorder %s11, 0
    %p31 = por %p29, %p30
    %p32 = scmp.ne.s32.totalorder %s21, %s24
    %p33 = scmp.eq.s32.totalorder %s16, 1
    %p34 = por %p32, %p33
    %p35 = scmp.ne.s32.totalorder %s24, %s25
    %p36 = scmp.eq.s32.totalorder %s16, 0
    %p37 = por %p35, %p36
    %p38 = scmp.ne.s32.totalorder %s24, %s25
    %p39 = scmp.eq.s32.totalorder %s17, 1
    %p40 = por %p38, %p39
    %p42 = scmp.ne.s32.totalorder %s25, %s41
    %p43 = scmp.eq.s32.totalorder %s17, 0
    %p44 = por %p42, %p43
    %s46 = sadd.s32 %s45, 1
    %p49 = scmp.eq.s32.totalorder %s11, 1
    %p50 = scmp.ne.s32.totalorder %s45, %s47
    %p51 = scmp.eq.s32.totalorder %s11, 0
    %p52 = por %p50, %p51
    %p53 = scmp.ne.s32.totalorder %s45, %s47
    %p54 = scmp.eq.s32.totalorder %s16, 1
    %p55 = por %p53, %p54
    %p56 = scmp.ne.s32.totalorder %s47, %s48
    %p57 = scmp.eq.s32.totalorder %s16, 0
    %p58 = por %p56, %p57
    %p59 = scmp.ne.s32.totalorder %s47, %s48
    %p60 = scmp.eq.s32.totalorder %s17, 1
    %p61 = por %p59, %p60
    %p63 = scmp.ne.s32.totalorder %s48, %s62
    %p64 = scmp.eq.s32.totalorder %s17, 0
    %p65 = por %p63, %p64
    %s67 = sadd.s32 %s66, 1
    %p70 = scmp.eq.s32.totalorder %s11, 1
    %p71 = scmp.ne.s32.totalorder %s66, %s68
    %p72 = scmp.eq.s32.totalorder %s11, 0
    %p73 = por %p71, %p72
    %p74 = scmp.ne.s32.totalorder %s66, %s68
    %p75 = scmp.eq.s32.totalorder %s16, 1
    %p76 = por %p74, %p75
    %p77 = scmp.ne.s32.totalorder %s68, %s69
    %p78 = scmp.eq.s32.totalorder %s16, 0
    %p79 = por %p77, %p78
    %p80 = scmp.ne.s32.totalorder %s68, %s69
    %p81 = scmp.eq.s32.totalorder %s17, 1
    %p82 = por %p80, %p81
    %p84 = scmp.ne.s32.totalorder %s69, %s83
    %p85 = scmp.eq.s32.totalorder %s17, 0
    %p86 = por %p84, %p85
    %s88 = sadd.s32 %s87, 1
    %p91 = scmp.eq.s32.totalorder %s11, 1
    %p92 = scmp.ne.s32.totalorder %s87, %s89
    %p93 = scmp.eq.s32.totalorder %s11, 0
    %p94 = por %p92, %p93
    %p95 = scmp.ne.s32.totalorder %s87, %s89
    %p96 = scmp.eq.s32.totalorder %s16, 1
    %p97 = por %p95, %p96
    %p98 = scmp.ne.s32.totalorder %s89, %s90
    %p99 = scmp.eq.s32.totalorder %s16, 0
    %p100 = por %p98, %p99
    %p101 = scmp.ne.s32.totalorder %s89, %s90
    %p102 = scmp.eq.s32.totalorder %s17, 1
    %p103 = por %p101, %p102
    %p105 = scmp.ne.s32.totalorder %s90, %s104
    %p106 = scmp.eq.s32.totalorder %s17, 0
    %p107 = por %p105, %p106
    %s109 = sadd.s32 %s108, 1
    %p112 = scmp.eq.s32.totalorder %s11, 1
    %p113 = scmp.ne.s32.totalorder %s108, %s110
    %p114 = scmp.eq.s32.totalorder %s11, 0
    %p115 = por %p113, %p114
    %p116 = scmp.ne.s32.totalorder %s108, %s110
    %p117 = scmp.eq.s32.totalorder %s16, 1
    %p118 = por %p116, %p117
    %p119 = scmp.ne.s32.totalorder %s110, %s111
    %p120 = scmp.eq.s32.totalorder %s16, 0
    %p121 = por %p119, %p120
    %p122 = scmp.ne.s32.totalorder %s110, %s111
    %p123 = scmp.eq.s32.totalorder %s17, 1
    %p124 = por %p122, %p123
    %p126 = scmp.ne.s32.totalorder %s111, %s125
    %p127 = scmp.eq.s32.totalorder %s17, 0
    %p128 = por %p126, %p127
    %s129 = ssub.s32 %s11, %s18
    %p130 = scmp.eq.s32.totalorder %s129, 0
    %s132 = sadd.s32 %s131, 1
    %s133 = scalar_select %p130, %s131, %s132
    %p136 = pneg %p130
    %p137 = scmp.eq.s32.totalorder %s11, 1
    %p138 = por %p136, %p137
    %p139 = scmp.ne.s32.totalorder %s131, %s134
    %p140 = scmp.eq.s32.totalorder %s11, 0
    %p141 = por %p139, %p140
    %p142 = scmp.ne.s32.totalorder %s131, %s134
    %p143 = scmp.eq.s32.totalorder %s16, 1
    %p144 = por %p142, %p143
    %p145 = scmp.ne.s32.totalorder %s134, %s135
    %p146 = scmp.eq.s32.totalorder %s16, 0
    %p147 = por %p145, %p146
    %p148 = scmp.ne.s32.totalorder %s134, %s135
    %p149 = scmp.eq.s32.totalorder %s17, 1
    %p150 = por %p148, %p149
    %p152 = scmp.ne.s32.totalorder %s135, %s151
    %p153 = scmp.eq.s32.totalorder %s17, 0
    %p154 = por %p152, %p153
    %p155 = scmp.le.s32.totalorder 1, %s11
    %p156 = scmp.lt.s32.totalorder %s11, 3
    %p157 = pnand %p155, %p156
    %p158 = pneg %p157
    // Predicated region
    $region9: #{residual_block2.1} parent=5 // pred_check
      _
    $region10: #{residual_block2.1} parent=5 // pred_check_branch
      %160 = sbr.rel (%p157) target = $region12
    $region11: #{residual_block2.1} parent=5 // pred_region
      %s161 = ssub.s32 %s11, 1
      // Predicated region
      $region13: #{residual_block2.1} parent=11 // pred_check
        %p162 = pneg %p58
      $region14: #{residual_block2.1} parent=11 // pred_check_branch
        %164 = sbr.rel (%p162) target = $region16
      $region15: #{residual_block2.1} parent=11 // pred_region
        _
      $region16: #{residual_block2.1} parent=11 // pred_fallthru
        _
      // Predicated region
      $region17: #{residual_block2.1} parent=11 // pred_check
        %p165 = pneg %p79
      $region18: #{residual_block2.1} parent=11 // pred_check_branch
        %167 = sbr.rel (%p165) target = $region20
      $region19: #{residual_block2.1} parent=11 // pred_region
        _
      $region20: #{residual_block2.1} parent=11 // pred_fallthru
        _
      // Predicated region
      $region21: #{residual_block2.1} parent=11 // pred_check
        %p168 = pneg %p100
      $region22: #{residual_block2.1} parent=11 // pred_check_branch
        %170 = sbr.rel (%p168) target = $region24
      $region23: #{residual_block2.1} parent=11 // pred_region
        _
      $region24: #{residual_block2.1} parent=11 // pred_fallthru
        _
      // Predicated region
      $region25: #{residual_block2.1} parent=11 // pred_check
        %p171 = pneg %p121
      $region26: #{residual_block2.1} parent=11 // pred_check_branch
        %173 = sbr.rel (%p171) target = $region28
      $region27: #{residual_block2.1} parent=11 // pred_region
        _
      $region28: #{residual_block2.1} parent=11 // pred_fallthru
        _
    $region12: #{residual_block2.1} parent=5 // pred_fallthru
      _
    %p174 = scmp.lt.s32.totalorder %s11, 2
    // Predicated region
    $region29: #{residual_block2.1} parent=5 // pred_check
      %p175 = pneg %p174
    $region30: #{residual_block2.1} parent=5 // pred_check_branch
      %177 = sbr.rel (%p175) target = $region32
    $region31: #{residual_block2.1} parent=5 // pred_region
      // Predicated region
      $region33: #{residual_block2.1} parent=31 // pred_check
        %p178 = pneg %p31
      $region34: #{residual_block2.1} parent=31 // pred_check_branch
        %180 = sbr.rel (%p178) target = $region36
      $region35: #{residual_block2.1} parent=31 // pred_region
        %p181 = scmp.lt.s32.totalorder %s11, 1
        %s182 = scalar_select %p181, %s11, 1
        %s183 = smul.addr %s182, 2
        %s184 = smul.addr %s183, 8
        %s185 = scalar_lea.vmem %s0, %s184
      $region36: #{residual_block2.1} parent=31 // pred_fallthru
        _
    $region32: #{residual_block2.1} parent=5 // pred_fallthru
      _
    %p186 = scmp.le.s32.totalorder 1, %s11
    %p187 = scmp.lt.s32.totalorder %s11, 3
    %p188 = pnand %p186, %p187
    %p189 = pneg %p188
    // Predicated region
    $region37: #{residual_block2.1} parent=5 // pred_check
      _
    $region38: #{residual_block2.1} parent=5 // pred_check_branch
      %191 = sbr.rel (%p188) target = $region40
    $region39: #{residual_block2.1} parent=5 // pred_region
      %s192 = ssub.s32 %s11, 1
      %p193 = scmp.lt.s32.totalorder %s16, 1
      %s194 = scalar_select %p193, %s16, 1
      %s195 = smul.addr %s194, 2
      %s196 = smul.addr %s195, 8
      %s197 = scalar_lea.vmem %s0, %s196
      %p198 = pneg %p37
      %p199 = pneg %p34
      %p200 = pneg %p58
      %p201 = pneg %p55
      %p202 = pneg %p79
      %p203 = pneg %p76
      %p204 = pneg %p100
      %p205 = pneg %p97
      %p206 = pneg %p121
      %p207 = pneg %p118
      %p208 = pneg %p147
      %p209 = pneg %p144
      %p210 = scmp.lt.s32.totalorder %s16, 1
      %s211 = scalar_select %p210, %s16, 1
      %s212 = smul.addr %s211, 2
      %s213 = smul.addr %s212, 8
      %s214 = scalar_lea.vmem %s5, %s213
      %p215 = scmp.lt.s32.totalorder %s16, 1
      %s216 = scalar_select %p215, %s16, 1
      %s217 = smul.addr %s216, 2
      %s218 = smul.addr %s217, 8
      %s219 = scalar_lea.vmem %s0, %s218
      %p220 = scmp.lt.s32.totalorder %s16, 1
      %s221 = scalar_select %p220, %s16, 1
      %s222 = smul.addr %s221, 2
      %s223 = smul.addr %s222, 8
      %s224 = scalar_lea.vmem %s5, %s223
      %v225 = vld [vmem:[%s219] sm:$0xff]
      %v226 = vld [vmem:[%s219 + $0x8] sm:$0xff]
      %vm227 = vcmask 523264
      %228 = vst.msk [vmem:[#allocation2 + $0x3] sm:$0xff] %vm227, %v225
      %229 = vst.msk [vmem:[#allocation2 + $0xb] sm:$0xff] %vm227, %v226
      %vm230 = vcmask 519171
      %231 = vst.msk [vmem:[#allocation2 - $0x3] sm:$0x8] %vm230, %v225
      %vm232 = vcmask 518146
      %233 = vst.msk [vmem:[#allocation2 - $0x1] sm:$0x4] %vm232, %v225
      %vm234 = vcmask 517121
      %235 = vst.msk [vmem:[#allocation2 + $0x1] sm:$0x2] %vm234, %v225
      %vm236 = vcmask 522246
      %237 = vst.msk [vmem:[#allocation2 + $0xd] sm:$0x40] %vm236, %v226
      %vm238 = vcmask 521221
      %239 = vst.msk [vmem:[#allocation2 + $0xf] sm:$0x20] %vm238, %v226
      %vm240 = vcmask 520196
      %241 = vst.msk [vmem:[#allocation2 + $0x11] sm:$0x10] %vm240, %v226
      %v242 = vld [vmem:[#allocation2] sm:$0xff]
      %v243 = vld [vmem:[#allocation2 + $0x8] sm:$0xff]
      %244 = vst.msk [vmem:[#allocation3] sm:$0xff] %vm227, %v242
      %245 = vst.msk [vmem:[#allocation3 + $0x20] sm:$0xff] %vm227, %v243
      %v246 = vld [vmem:[#allocation2 + $0x1] sm:$0xff]
      %v247 = vld [vmem:[#allocation2 + $0x9] sm:$0xff]
      %250 = vrot.lane.b32.xlu0 %v246, 64
      %v251 = vpop.permute.xlu0 %250
      %252 = vrot.lane.b32.xlu0 %v247, 64
      %v253 = vpop.permute.xlu0 %252
      %vm256 = vcmask 1048064
      %257 = vst.msk [vmem:[#allocation3] sm:$0xff] %vm256, %v251
      %258 = vst.msk [vmem:[#allocation3 + $0x20] sm:$0xff] %vm256, %v253
      %v259 = vld [vmem:[#allocation2 + $0x2] sm:$0xff]
      %v260 = vld [vmem:[#allocation2 + $0xa] sm:$0xff]
      %261 = vst.msk [vmem:[#allocation3 + $0x8] sm:$0xff] %vm227, %v259
      %262 = vst.msk [vmem:[#allocation3 + $0x28] sm:$0xff] %vm227, %v260
      %v263 = vld [vmem:[#allocation2 + $0x3] sm:$0xff]
      %v264 = vld [vmem:[#allocation2 + $0xb] sm:$0xff]
      %267 = vrot.lane.b32.xlu0 %v263, 64
      %v268 = vpop.permute.xlu0 %267
      %269 = vrot.lane.b32.xlu0 %v264, 64
      %v270 = vpop.permute.xlu0 %269
      %273 = vst.msk [vmem:[#allocation3 + $0x8] sm:$0xff] %vm256, %v268
      %274 = vst.msk [vmem:[#allocation3 + $0x28] sm:$0xff] %vm256, %v270
      %v275 = vld [vmem:[#allocation2 + $0x4] sm:$0xff]
      %v276 = vld [vmem:[#allocation2 + $0xc] sm:$0xff]
      %277 = vst.msk [vmem:[#allocation3 + $0x10] sm:$0xff] %vm227, %v275
      %278 = vst.msk [vmem:[#allocation3 + $0x30] sm:$0xff] %vm227, %v276
      %v279 = vld [vmem:[#allocation2 + $0x5] sm:$0xff]
      %v280 = vld [vmem:[#allocation2 + $0xd] sm:$0xff]
      %283 = vrot.lane.b32.xlu0 %v279, 64
      %v284 = vpop.permute.xlu0 %283
      %285 = vrot.lane.b32.xlu0 %v280, 64
      %v286 = vpop.permute.xlu0 %285
      %289 = vst.msk [vmem:[#allocation3 + $0x10] sm:$0xff] %vm256, %v284
      %290 = vst.msk [vmem:[#allocation3 + $0x30] sm:$0xff] %vm256, %v286
      %v291 = vld [vmem:[#allocation2 + $0x6] sm:$0xff]
      %v292 = vld [vmem:[#allocation2 + $0xe] sm:$0xff]
      %293 = vst.msk [vmem:[#allocation3 + $0x18] sm:$0xff] %vm227, %v291
      %294 = vst.msk [vmem:[#allocation3 + $0x38] sm:$0xff] %vm227, %v292
      %v295 = vld [vmem:[#allocation3] sm:$0xff]
      %v296 = vld [vmem:[#allocation3 + $0x8] sm:$0xff]
      %v297 = vld [vmem:[#allocation3 + $0x10] sm:$0xff]
      %v298 = vld [vmem:[#allocation3 + $0x18] sm:$0xff]
      %v299 = vld [vmem:[#allocation3 + $0x20] sm:$0xff]
      %v300 = vld [vmem:[#allocation3 + $0x28] sm:$0xff]
      %v301 = vld [vmem:[#allocation3 + $0x30] sm:$0xff]
      %v302 = vld [vmem:[#allocation3 + $0x38] sm:$0xff]
      %v303 = vld [vmem:[%s1] sm:$0xff]
      %v304 = vld [vmem:[%s1 + $0x8] sm:$0xff]
      %v305 = vld [vmem:[%s1 + $0x10] sm:$0xff]
      %v306 = vld [vmem:[%s1 + $0x18] sm:$0xff]
      %v307 = vld [vmem:[%s1 + $0x20] sm:$0xff]
      %v308 = vld [vmem:[%s1 + $0x28] sm:$0xff]
      %v309 = vld [vmem:[%s1 + $0x30] sm:$0xff]
      %v310 = vld [vmem:[%s1 + $0x38] sm:$0xff]
      %v311 = vld [vmem:[%s1 + $0x40] sm:$0xff]
      %v312 = vld [vmem:[%s1 + $0x48] sm:$0xff]
      %v313 = vld [vmem:[%s1 + $0x50] sm:$0xff]
      %v314 = vld [vmem:[%s1 + $0x58] sm:$0xff]
      %v315 = vld [vmem:[%s1 + $0x60] sm:$0xff]
      %v316 = vld [vmem:[%s1 + $0x68] sm:$0xff]
      %v317 = vld [vmem:[%s1 + $0x70] sm:$0xff]
      %v318 = vld [vmem:[%s1 + $0x78] sm:$0xff]
      %v319 = vld [vmem:[%s1 + $0x80] sm:$0xff]
      %v320 = vld [vmem:[%s1 + $0x88] sm:$0xff]
      %v321 = vld [vmem:[%s1 + $0x90] sm:$0xff]
      %v322 = vld [vmem:[%s1 + $0x98] sm:$0xff]
      %v323 = vld [vmem:[%s1 + $0xa0] sm:$0xff]
      %v324 = vld [vmem:[%s1 + $0xa8] sm:$0xff]
      %v325 = vld [vmem:[%s1 + $0xb0] sm:$0xff]
      %v326 = vld [vmem:[%s1 + $0xb8] sm:$0xff]
      %v327 = vld [vmem:[%s1 + $0xc0] sm:$0xff]
      %v328 = vld [vmem:[%s1 + $0xc8] sm:$0xff]
      %v329 = vld [vmem:[%s1 + $0xd0] sm:$0xff]
      %v330 = vld [vmem:[%s1 + $0xd8] sm:$0xff]
      %v331 = vld [vmem:[%s1 + $0xe0] sm:$0xff]
      %v332 = vld [vmem:[%s1 + $0xe8] sm:$0xff]
      %v333 = vld [vmem:[%s1 + $0xf0] sm:$0xff]
      %v334 = vld [vmem:[%s1 + $0xf8] sm:$0xff]
      %v335 = vld [vmem:[%s1 + $0x100] sm:$0xff]
      %v336 = vld [vmem:[%s1 + $0x108] sm:$0xff]
      %v337 = vld [vmem:[%s1 + $0x110] sm:$0xff]
      %v338 = vld [vmem:[%s1 + $0x118] sm:$0xff]
      %v339 = vld [vmem:[%s1 + $0x120] sm:$0xff]
      %v340 = vld [vmem:[%s1 + $0x128] sm:$0xff]
      %v341 = vld [vmem:[%s1 + $0x130] sm:$0xff]
      %v342 = vld [vmem:[%s1 + $0x138] sm:$0xff]
      %v343 = vld [vmem:[%s1 + $0x140] sm:$0xff]
      %v344 = vld [vmem:[%s1 + $0x148] sm:$0xff]
      %v345 = vld [vmem:[%s1 + $0x150] sm:$0xff]
      %v346 = vld [vmem:[%s1 + $0x158] sm:$0xff]
      %v347 = vld [vmem:[%s1 + $0x160] sm:$0xff]
      %v348 = vld [vmem:[%s1 + $0x168] sm:$0xff]
      %v349 = vld [vmem:[%s1 + $0x170] sm:$0xff]
      %v350 = vld [vmem:[%s1 + $0x178] sm:$0xff]
      %v351 = vld [vmem:[%s1 + $0x180] sm:$0xff]
      %v352 = vld [vmem:[%s1 + $0x188] sm:$0xff]
      %v353 = vld [vmem:[%s1 + $0x190] sm:$0xff]
      %v354 = vld [vmem:[%s1 + $0x198] sm:$0xff]
      %v355 = vld [vmem:[%s1 + $0x1a0] sm:$0xff]
      %v356 = vld [vmem:[%s1 + $0x1a8] sm:$0xff]
      %v357 = vld [vmem:[%s1 + $0x1b0] sm:$0xff]
      %v358 = vld [vmem:[%s1 + $0x1b8] sm:$0xff]
      %v359 = vld [vmem:[%s2] sm:$0x1]
      %v361 = vperm.slane %v359, 0
      %v364 = vsel %vm227, %v298, 0
      %v367 = vsel %vm227, %v302, 0
      %369 = vmatpush.msra.mxu0 %v318
      %370 = vmatpush.msra.mxu0 %v317
      %371 = vmatpush.msra.mxu0 %v316
      %372 = vmatpush.msra.mxu0 %v315
      %373 = vmatpush.msra.mxu0 %v314
      %374 = vmatpush.msra.mxu0 %v313
      %375 = vmatpush.msra.mxu0 %v312
      %376 = vmatpush.msra.mxu0 %v311
      %377 = vmatpush.msra.mxu0 %v310
      %378 = vmatpush.msra.mxu0 %v309
      %379 = vmatpush.msra.mxu0 %v308
      %380 = vmatpush.msra.mxu0 %v307
      %381 = vmatpush.msra.mxu0 %v306
      %382 = vmatpush.msra.mxu0 %v305
      %383 = vmatpush.msra.mxu0 %v304
      %384 = vmatpush.msra.mxu0 %v303
      %385 = vmatmul.f32.gmra.mxu0 %v295
      %v386 = vpop.f32.mrf.mxu0
      %v387 = vadd.f32 %v361, %v386
      %388 = vmatmul.f32.gmra.mxu0 %v299
      %v389 = vpop.f32.mrf.mxu0
      %v390 = vadd.f32 %v361, %v389
      %391 = vdwg.mxu0
      %392 = vmatpush.msra.mxu0 %v334
      %393 = vmatpush.msra.mxu0 %v333
      %394 = vmatpush.msra.mxu0 %v332
      %395 = vmatpush.msra.mxu0 %v331
      %396 = vmatpush.msra.mxu0 %v330
      %397 = vmatpush.msra.mxu0 %v329
      %398 = vmatpush.msra.mxu0 %v328
      %399 = vmatpush.msra.mxu0 %v327
      %400 = vmatpush.msra.mxu0 %v326
      %401 = vmatpush.msra.mxu0 %v325
      %402 = vmatpush.msra.mxu0 %v324
      %403 = vmatpush.msra.mxu0 %v323
      %404 = vmatpush.msra.mxu0 %v322
      %405 = vmatpush.msra.mxu0 %v321
      %406 = vmatpush.msra.mxu0 %v320
      %407 = vmatpush.msra.mxu0 %v319
      %408 = vmatmul.f32.gmra.mxu0 %v296
      %v409 = vpop.f32.mrf.mxu0
      %v410 = vadd.f32 %v387, %v409
      %411 = vmatmul.f32.gmra.mxu0 %v300
      %v412 = vpop.f32.mrf.mxu0
      %v413 = vadd.f32 %v390, %v412
      %414 = vdwg.mxu0
      %415 = vmatpush.msra.mxu0 %v350
      %416 = vmatpush.msra.mxu0 %v349
      %417 = vmatpush.msra.mxu0 %v348
      %418 = vmatpush.msra.mxu0 %v347
      %419 = vmatpush.msra.mxu0 %v346
      %420 = vmatpush.msra.mxu0 %v345
      %421 = vmatpush.msra.mxu0 %v344
      %422 = vmatpush.msra.mxu0 %v343
      %423 = vmatpush.msra.mxu0 %v342
      %424 = vmatpush.msra.mxu0 %v341
      %425 = vmatpush.msra.mxu0 %v340
      %426 = vmatpush.msra.mxu0 %v339
      %427 = vmatpush.msra.mxu0 %v338
      %428 = vmatpush.msra.mxu0 %v337
      %429 = vmatpush.msra.mxu0 %v336
      %430 = vmatpush.msra.mxu0 %v335
      %431 = vmatmul.f32.gmra.mxu0 %v297
      %v432 = vpop.f32.mrf.mxu0
      %v433 = vadd.f32 %v410, %v432
      %434 = vmatmul.f32.gmra.mxu0 %v301
      %v435 = vpop.f32.mrf.mxu0
      %v436 = vadd.f32 %v413, %v435
      %437 = vdwg.mxu0
      %438 = vmatpush.msra.mxu0 0.0
      %439 = vmatpush.msra.mxu0 0.0
      %440 = vmatpush.msra.mxu0 0.0
      %441 = vmatpush.msra.mxu0 0.0
      %442 = vmatpush.msra.mxu0 0.0
      %443 = vmatpush.msra.mxu0 0.0
      %444 = vmatpush.msra.mxu0 0.0
      %445 = vmatpush.msra.mxu0 0.0
      %446 = vmatpush.msra.mxu0 %v358
      %447 = vmatpush.msra.mxu0 %v357
      %448 = vmatpush.msra.mxu0 %v356
      %449 = vmatpush.msra.mxu0 %v355
      %450 = vmatpush.msra.mxu0 %v354
      %451 = vmatpush.msra.mxu0 %v353
      %452 = vmatpush.msra.mxu0 %v352
      %453 = vmatpush.msra.mxu0 %v351
      %454 = vmatmul.f32.gmra.mxu0 %v364
      %v455 = vpop.f32.mrf.mxu0
      %v456 = vadd.f32 %v433, %v455
      %457 = vmatmul.f32.gmra.mxu0 %v367
      %v458 = vpop.f32.mrf.mxu0
      %v459 = vadd.f32 %v436, %v458
      %460 = vdwg.mxu0
      %v461 = vmax.f32 %v456, 0.0
      %v462 = vmax.f32 %v459, 0.0
      %463 = vst.msk [vmem:[#allocation2 + $0x3] sm:$0xff] %vm227, %v461
      %464 = vst.msk [vmem:[#allocation2 + $0xb] sm:$0xff] %vm227, %v462
      %465 = vst.msk [vmem:[#allocation2 - $0x3] sm:$0x8] %vm230, %v461
      %466 = vst.msk [vmem:[#allocation2 - $0x1] sm:$0x4] %vm232, %v461
      %467 = vst.msk [vmem:[#allocation2 + $0x1] sm:$0x2] %vm234, %v461
      %468 = vst.msk [vmem:[#allocation2 + $0xd] sm:$0x40] %vm236, %v462
      %469 = vst.msk [vmem:[#allocation2 + $0xf] sm:$0x20] %vm238, %v462
      %470 = vst.msk [vmem:[#allocation2 + $0x11] sm:$0x10] %vm240, %v462
      %v471 = vld [vmem:[#allocation2] sm:$0xff]
      %v472 = vld [vmem:[#allocation2 + $0x8] sm:$0xff]
      %473 = vst.msk [vmem:[#allocation3] sm:$0xff] %vm227, %v471
      %474 = vst.msk [vmem:[#allocation3 + $0x20] sm:$0xff] %vm227, %v472
      %v475 = vld [vmem:[#allocation2 + $0x1] sm:$0xff]
      %v476 = vld [vmem:[#allocation2 + $0x9] sm:$0xff]
      %479 = vrot.lane.b32.xlu0 %v475, 64
      %v480 = vpop.permute.xlu0 %479
      %481 = vrot.lane.b32.xlu0 %v476, 64
      %v482 = vpop.permute.xlu0 %481
      %485 = vst.msk [vmem:[#allocation3] sm:$0xff] %vm256, %v480
      %486 = vst.msk [vmem:[#allocation3 + $0x20] sm:$0xff] %vm256, %v482
      %v487 = vld [vmem:[#allocation2 + $0x2] sm:$0xff]
      %v488 = vld [vmem:[#allocation2 + $0xa] sm:$0xff]
      %489 = vst.msk [vmem:[#allocation3 + $0x8] sm:$0xff] %vm227, %v487
      %490 = vst.msk [vmem:[#allocation3 + $0x28] sm:$0xff] %vm227, %v488
      %v491 = vld [vmem:[#allocation2 + $0x3] sm:$0xff]
      %v492 = vld [vmem:[#allocation2 + $0xb] sm:$0xff]
      %495 = vrot.lane.b32.xlu0 %v491, 64
      %v496 = vpop.permute.xlu0 %495
      %497 = vrot.lane.b32.xlu0 %v492, 64
      %v498 = vpop.permute.xlu0 %497
      %501 = vst.msk [vmem:[#allocation3 + $0x8] sm:$0xff] %vm256, %v496
      %502 = vst.msk [vmem:[#allocation3 + $0x28] sm:$0xff] %vm256, %v498
      %v503 = vld [vmem:[#allocation2 + $0x4] sm:$0xff]
      %v504 = vld [vmem:[#allocation2 + $0xc] sm:$0xff]
      %505 = vst.msk [vmem:[#allocation3 + $0x10] sm:$0xff] %vm227, %v503
      %506 = vst.msk [vmem:[#allocation3 + $0x30] sm:$0xff] %vm227, %v504
      %v507 = vld [vmem:[#allocation2 + $0x5] sm:$0xff]
      %v508 = vld [vmem:[#allocation2 + $0xd] sm:$0xff]
      %511 = vrot.lane.b32.xlu0 %v507, 64
      %v512 = vpop.permute.xlu0 %511
      %513 = vrot.lane.b32.xlu0 %v508, 64
      %v514 = vpop.permute.xlu0 %513
      %517 = vst.msk [vmem:[#allocation3 + $0x10] sm:$0xff] %vm256, %v512
      %518 = vst.msk [vmem:[#allocation3 + $0x30] sm:$0xff] %vm256, %v514
      %v519 = vld [vmem:[#allocation2 + $0x6] sm:$0xff]
      %v520 = vld [vmem:[#allocation2 + $0xe] sm:$0xff]
      %521 = vst.msk [vmem:[#allocation3 + $0x18] sm:$0xff] %vm227, %v519
      %522 = vst.msk [vmem:[#allocation3 + $0x38] sm:$0xff] %vm227, %v520
      %v523 = vld [vmem:[#allocation3] sm:$0xff]
      %v524 = vld [vmem:[#allocation3 + $0x8] sm:$0xff]
      %v525 = vld [vmem:[#allocation3 + $0x10] sm:$0xff]
      %v526 = vld [vmem:[#allocation3 + $0x18] sm:$0xff]
      %v527 = vld [vmem:[#allocation3 + $0x20] sm:$0xff]
      %v528 = vld [vmem:[#allocation3 + $0x28] sm:$0xff]
      %v529 = vld [vmem:[#allocation3 + $0x30] sm:$0xff]
      %v530 = vld [vmem:[#allocation3 + $0x38] sm:$0xff]
      %v531 = vld [vmem:[%s3] sm:$0xff]
      %v532 = vld [vmem:[%s3 + $0x8] sm:$0xff]
      %v533 = vld [vmem:[%s3 + $0x10] sm:$0xff]
      %v534 = vld [vmem:[%s3 + $0x18] sm:$0xff]
      %v535 = vld [vmem:[%s3 + $0x20] sm:$0xff]
      %v536 = vld [vmem:[%s3 + $0x28] sm:$0xff]
      %v537 = vld [vmem:[%s3 + $0x30] sm:$0xff]
      %v538 = vld [vmem:[%s3 + $0x38] sm:$0xff]
      %v539 = vld [vmem:[%s3 + $0x40] sm:$0xff]
      %v540 = vld [vmem:[%s3 + $0x48] sm:$0xff]
      %v541 = vld [vmem:[%s3 + $0x50] sm:$0xff]
      %v542 = vld [vmem:[%s3 + $0x58] sm:$0xff]
      %v543 = vld [vmem:[%s3 + $0x60] sm:$0xff]
      %v544 = vld [vmem:[%s3 + $0x68] sm:$0xff]
      %v545 = vld [vmem:[%s3 + $0x70] sm:$0xff]
      %v546 = vld [vmem:[%s3 + $0x78] sm:$0xff]
      %v547 = vld [vmem:[%s3 + $0x80] sm:$0xff]
      %v548 = vld [vmem:[%s3 + $0x88] sm:$0xff]
      %v549 = vld [vmem:[%s3 + $0x90] sm:$0xff]
      %v550 = vld [vmem:[%s3 + $0x98] sm:$0xff]
      %v551 = vld [vmem:[%s3 + $0xa0] sm:$0xff]
      %v552 = vld [vmem:[%s3 + $0xa8] sm:$0xff]
      %v553 = vld [vmem:[%s3 + $0xb0] sm:$0xff]
      %v554 = vld [vmem:[%s3 + $0xb8] sm:$0xff]
      %v555 = vld [vmem:[%s3 + $0xc0] sm:$0xff]
      %v556 = vld [vmem:[%s3 + $0xc8] sm:$0xff]
      %v557 = vld [vmem:[%s3 + $0xd0] sm:$0xff]
      %v558 = vld [vmem:[%s3 + $0xd8] sm:$0xff]
      %v559 = vld [vmem:[%s3 + $0xe0] sm:$0xff]
      %v560 = vld [vmem:[%s3 + $0xe8] sm:$0xff]
      %v561 = vld [vmem:[%s3 + $0xf0] sm:$0xff]
      %v562 = vld [vmem:[%s3 + $0xf8] sm:$0xff]
      %v563 = vld [vmem:[%s3 + $0x100] sm:$0xff]
      %v564 = vld [vmem:[%s3 + $0x108] sm:$0xff]
      %v565 = vld [vmem:[%s3 + $0x110] sm:$0xff]
      %v566 = vld [vmem:[%s3 + $0x118] sm:$0xff]
      %v567 = vld [vmem:[%s3 + $0x120] sm:$0xff]
      %v568 = vld [vmem:[%s3 + $0x128] sm:$0xff]
      %v569 = vld [vmem:[%s3 + $0x130] sm:$0xff]
      %v570 = vld [vmem:[%s3 + $0x138] sm:$0xff]
      %v571 = vld [vmem:[%s3 + $0x140] sm:$0xff]
      %v572 = vld [vmem:[%s3 + $0x148] sm:$0xff]
      %v573 = vld [vmem:[%s3 + $0x150] sm:$0xff]
      %v574 = vld [vmem:[%s3 + $0x158] sm:$0xff]
      %v575 = vld [vmem:[%s3 + $0x160] sm:$0xff]
      %v576 = vld [vmem:[%s3 + $0x168] sm:$0xff]
      %v577 = vld [vmem:[%s3 + $0x170] sm:$0xff]
      %v578 = vld [vmem:[%s3 + $0x178] sm:$0xff]
      %v579 = vld [vmem:[%s3 + $0x180] sm:$0xff]
      %v580 = vld [vmem:[%s3 + $0x188] sm:$0xff]
      %v581 = vld [vmem:[%s3 + $0x190] sm:$0xff]
      %v582 = vld [vmem:[%s3 + $0x198] sm:$0xff]
      %v583 = vld [vmem:[%s3 + $0x1a0] sm:$0xff]
      %v584 = vld [vmem:[%s3 + $0x1a8] sm:$0xff]
      %v585 = vld [vmem:[%s3 + $0x1b0] sm:$0xff]
      %v586 = vld [vmem:[%s3 + $0x1b8] sm:$0xff]
      %v587 = vld [vmem:[%s4] sm:$0x1]
      %v589 = vperm.slane %v587, 0
      %v592 = vsel %vm227, %v526, 0
      %v595 = vsel %vm227, %v530, 0
      %597 = vmatpush.msra.mxu0 %v546
      %598 = vmatpush.msra.mxu0 %v545
      %599 = vmatpush.msra.mxu0 %v544
      %600 = vmatpush.msra.mxu0 %v543
      %601 = vmatpush.msra.mxu0 %v542
      %602 = vmatpush.msra.mxu0 %v541
      %603 = vmatpush.msra.mxu0 %v540
      %604 = vmatpush.msra.mxu0 %v539
      %605 = vmatpush.msra.mxu0 %v538
      %606 = vmatpush.msra.mxu0 %v537
      %607 = vmatpush.msra.mxu0 %v536
      %608 = vmatpush.msra.mxu0 %v535
      %609 = vmatpush.msra.mxu0 %v534
      %610 = vmatpush.msra.mxu0 %v533
      %611 = vmatpush.msra.mxu0 %v532
      %612 = vmatpush.msra.mxu0 %v531
      %613 = vmatmul.f32.gmra.mxu0 %v523
      %v614 = vpop.f32.mrf.mxu0
      %v615 = vadd.f32 %v589, %v614
      %616 = vmatmul.f32.gmra.mxu0 %v527
      %v617 = vpop.f32.mrf.mxu0
      %v618 = vadd.f32 %v589, %v617
      %619 = vdwg.mxu0
      %620 = vmatpush.msra.mxu0 %v562
      %621 = vmatpush.msra.mxu0 %v561
      %622 = vmatpush.msra.mxu0 %v560
      %623 = vmatpush.msra.mxu0 %v559
      %624 = vmatpush.msra.mxu0 %v558
      %625 = vmatpush.msra.mxu0 %v557
      %626 = vmatpush.msra.mxu0 %v556
      %627 = vmatpush.msra.mxu0 %v555
      %628 = vmatpush.msra.mxu0 %v554
      %629 = vmatpush.msra.mxu0 %v553
      %630 = vmatpush.msra.mxu0 %v552
      %631 = vmatpush.msra.mxu0 %v551
      %632 = vmatpush.msra.mxu0 %v550
      %633 = vmatpush.msra.mxu0 %v549
      %634 = vmatpush.msra.mxu0 %v548
      %635 = vmatpush.msra.mxu0 %v547
      %636 = vmatmul.f32.gmra.mxu0 %v524
      %v637 = vpop.f32.mrf.mxu0
      %v638 = vadd.f32 %v615, %v637
      %639 = vmatmul.f32.gmra.mxu0 %v528
      %v640 = vpop.f32.mrf.mxu0
      %v641 = vadd.f32 %v618, %v640
      %642 = vdwg.mxu0
      %643 = vmatpush.msra.mxu0 %v578
      %644 = vmatpush.msra.mxu0 %v577
      %645 = vmatpush.msra.mxu0 %v576
      %646 = vmatpush.msra.mxu0 %v575
      %647 = vmatpush.msra.mxu0 %v574
      %648 = vmatpush.msra.mxu0 %v573
      %649 = vmatpush.msra.mxu0 %v572
      %650 = vmatpush.msra.mxu0 %v571
      %651 = vmatpush.msra.mxu0 %v570
      %652 = vmatpush.msra.mxu0 %v569
      %653 = vmatpush.msra.mxu0 %v568
      %654 = vmatpush.msra.mxu0 %v567
      %655 = vmatpush.msra.mxu0 %v566
      %656 = vmatpush.msra.mxu0 %v565
      %657 = vmatpush.msra.mxu0 %v564
      %658 = vmatpush.msra.mxu0 %v563
      %659 = vmatmul.f32.gmra.mxu0 %v525
      %v660 = vpop.f32.mrf.mxu0
      %v661 = vadd.f32 %v638, %v660
      %662 = vmatmul.f32.gmra.mxu0 %v529
      %v663 = vpop.f32.mrf.mxu0
      %v664 = vadd.f32 %v641, %v663
      %665 = vdwg.mxu0
      %666 = vmatpush.msra.mxu0 0.0
      %667 = vmatpush.msra.mxu0 0.0
      %668 = vmatpush.msra.mxu0 0.0
      %669 = vmatpush.msra.mxu0 0.0
      %670 = vmatpush.msra.mxu0 0.0
      %671 = vmatpush.msra.mxu0 0.0
      %672 = vmatpush.msra.mxu0 0.0
      %673 = vmatpush.msra.mxu0 0.0
      %674 = vmatpush.msra.mxu0 %v586
      %675 = vmatpush.msra.mxu0 %v585
      %676 = vmatpush.msra.mxu0 %v584
      %677 = vmatpush.msra.mxu0 %v583
      %678 = vmatpush.msra.mxu0 %v582
      %679 = vmatpush.msra.mxu0 %v581
      %680 = vmatpush.msra.mxu0 %v580
      %681 = vmatpush.msra.mxu0 %v579
      %682 = vmatmul.f32.gmra.mxu0 %v592
      %v683 = vpop.f32.mrf.mxu0
      %v684 = vadd.f32 %v661, %v683
      %685 = vmatmul.f32.gmra.mxu0 %v595
      %v686 = vpop.f32.mrf.mxu0
      %v687 = vadd.f32 %v664, %v686
      %688 = vdwg.mxu0
      %v689 = vadd.f32 %v225, %v684
      %v690 = vadd.f32 %v226, %v687
      %691 = vst.msk [vmem:[%s224] sm:$0xff] %vm227, %v689
      %692 = vst.msk [vmem:[%s224 + $0x8] sm:$0xff] %vm227, %v690
      %p693 = scmp.lt.s32.totalorder %s16, 1
      %s694 = scalar_select %p693, %s16, 1
      %s695 = smul.addr %s694, 2
      %s696 = smul.addr %s695, 8
      %s697 = scalar_lea.vmem %s5, %s696
      // Predicated region
      $region41: #{residual_block2.1} parent=39 // pred_check
        %p698 = pneg %p144
      $region42: #{residual_block2.1} parent=39 // pred_check_branch
        %700 = sbr.rel (%p698) target = $region44
      $region43: #{residual_block2.1} parent=39 // pred_region
        _
      $region44: #{residual_block2.1} parent=39 // pred_fallthru
        _
    $region40: #{residual_block2.1} parent=5 // pred_fallthru
      _
    %p701 = scmp.le.s32.totalorder 2, %s11
    // Predicated region
    $region45: #{residual_block2.1} parent=5 // pred_check
      %p702 = pneg %p701
    $region46: #{residual_block2.1} parent=5 // pred_check_branch
      %704 = sbr.rel (%p702) target = $region48
    $region47: #{residual_block2.1} parent=5 // pred_region
      %s705 = ssub.s32 %s11, 2
      // Predicated region
      $region49: #{residual_block2.1} parent=47 // pred_check
        %p706 = pneg %p150
      $region50: #{residual_block2.1} parent=47 // pred_check_branch
        %708 = sbr.rel (%p706) target = $region52
      $region51: #{residual_block2.1} parent=47 // pred_region
        %p709 = scmp.lt.s32.totalorder %s17, 1
        %s710 = scalar_select %p709, %s17, 1
        %s711 = smul.addr %s710, 2
        %s712 = smul.addr %s711, 8
        %s713 = scalar_lea.vmem %s5, %s712
      $region52: #{residual_block2.1} parent=47 // pred_fallthru
        _
    $region48: #{residual_block2.1} parent=5 // pred_fallthru
      _
  $region6: #{residual_block2.1} parent=0 // loop_footer
    %s15 = sadd.s32 1, %s11
  $region7: #{residual_block2.1} parent=0 // loop_footer_branch
    %10 = sbr.rel target = $region3
  $region8: #{residual_block2.1} parent=0 // loop_exit
    _

</llo_original>
